<compile_context>
chip_gen: v5e
topology: v5e:2x2
jax: 0.10.0
libtpu: 0.0.40
codegen_flags: <defaults>
</compile_context>

<pallas_src>
import functools

import jax
import jax.numpy as jnp
from jax.experimental import pallas as pl
from jax.experimental.pallas import tpu as pltpu


def _round_up(a: int, b: int) -> int:
    return (a + b - 1) // b * b


def _tpu_config():
    """(generation, default block_m, feature alignment, vmem_limit_bytes)."""
    kind = ""
    try:
        kind = jax.devices()[0].device_kind.lower()
    except Exception:
        pass
    if "v7" in kind:
        gen = "v7x"
    elif "v6" in kind:
        gen = "v6e"
    elif "v5 lite" in kind or "v5e" in kind or "v5lite" in kind:
        gen = "v5e"
    else:
        gen = "other"

    try:
        vmem_cap = int(pltpu.get_tpu_info().vmem_capacity_bytes)
    except Exception:
        vmem_cap = (64 << 20) if gen == "v7x" else (128 << 20)
    # Leave headroom for Mosaic internal scratch/semaphores; never the full 64 MiB
    # on v7x, and don't artificially cap v5e/v6e's 128 MiB at 64.
    vmem_limit = min(int(0.80 * vmem_cap), 100 << 20)

    block_m = {"v5e": 384, "v6e": 1024, "v7x": 512}.get(gen, 512)
    align = 128 if gen == "v5e" else 256
    return gen, block_m, align, vmem_limit


def prepare_ffn_params(w1, b1, w2, b2, *, align=None, compute_dtype=jnp.bfloat16):
    """Pad + cast FFN parameters ONCE (hoisted out of the per-call jitted path)."""
    if align is None:
        _, _, align, _ = _tpu_config()
    C, H = w1.shape
    Cp, Hp = _round_up(C, align), _round_up(H, align)

    def pad2(a, rows, cols):
        if a.shape == (rows, cols):
            return a
        return jnp.pad(a, ((0, rows - a.shape[0]), (0, cols - a.shape[1])))

    w1p = pad2(w1, Cp, Hp).astype(compute_dtype)
    w2p = pad2(w2, Hp, Cp).astype(compute_dtype)
    b1p = pad2(b1.reshape(1, H), 1, Hp).astype(jnp.float32)
    b2p = pad2(b2.reshape(1, C), 1, Cp).astype(jnp.float32)
    return w1p, b1p, w2p, b2p


# --------------------------------------------------------------------------- #
# Kernels
# --------------------------------------------------------------------------- #
def ffn_kernel_resident(x_ref, w1_ref, b1_ref, w2_ref, b2_ref, o_ref):
    """Weights fully VMEM-resident: one fused pass per row tile, no reduction axis."""
    h = jnp.dot(x_ref[...], w1_ref[...], preferred_element_type=jnp.float32)
    h = jnp.maximum(h + b1_ref[...], 0.0)
    out = jnp.dot(h.astype(w2_ref.dtype), w2_ref[...],
                  preferred_element_type=jnp.float32)
    o_ref[...] = (out + b2_ref[...]).astype(o_ref.dtype)


def ffn_kernel_stream_accum_out(x_ref, w1_ref, b1_ref, w2_ref, b2_ref, o_ref):
    """Streamed weights; f32 output block doubles as the accumulator (no scratch)."""
    j = pl.program_id(1)
    th = w1_ref.shape[1]

    @pl.when(j == 0)
    def _():
        o_ref[...] = jnp.zeros_like(o_ref)

    start = pl.multiple_of(j * th, 128)
    h = jnp.dot(x_ref[...], w1_ref[...], preferred_element_type=jnp.float32)
    h = jnp.maximum(h + b1_ref[:, pl.ds(start, th)], 0.0)
    o_ref[...] += jnp.dot(h.astype(w2_ref.dtype), w2_ref[...],
                          preferred_element_type=jnp.float32)

    @pl.when(j == pl.num_programs(1) - 1)
    def _():
        o_ref[...] += b2_ref[...]


def ffn_kernel_stream_scratch(x_ref, w1_ref, b1_ref, w2_ref, b2_ref, o_ref, acc_ref):
    """Streamed weights; non-f32 output needs a separate f32 accumulator."""
    j = pl.program_id(1)
    th = w1_ref.shape[1]

    @pl.when(j == 0)
    def _():
        acc_ref[...] = jnp.zeros_like(acc_ref)

    start = pl.multiple_of(j * th, 128)
    h = jnp.dot(x_ref[...], w1_ref[...], preferred_element_type=jnp.float32)
    h = jnp.maximum(h + b1_ref[:, pl.ds(start, th)], 0.0)
    acc_ref[...] += jnp.dot(h.astype(w2_ref.dtype), w2_ref[...],
                            preferred_element_type=jnp.float32)

    @pl.when(j == pl.num_programs(1) - 1)
    def _():
        o_ref[...] = (acc_ref[...] + b2_ref[...]).astype(o_ref.dtype)


# --------------------------------------------------------------------------- #
# Wrapper
# --------------------------------------------------------------------------- #
@functools.partial(jax.jit, static_argnames=("block_m", "h_tile"))
def feedforward(x, w1p, b1p, w2p, b2p, *, block_m=None, h_tile=512):
    B, T, C = x.shape
    M = B * T
    Cp, Hp = w1p.shape
    out_dtype = x.dtype
    compute_dtype = w1p.dtype

    gen, default_bm, align, vmem_limit = _tpu_config()
    if block_m is None:
        block_m = default_bm

    out_b = jnp.dtype(out_dtype).itemsize
    w_b = jnp.dtype(compute_dtype).itemsize

    # Row tile: large MXU/roofline-friendly tile for big M, 16-row (bf16 sublane
    # native) rounding for small/decode-style M.
    bm = block_m if M >= block_m else max(16, _round_up(M, 16))

    def _row_tiling(bm_):
        mp = _round_up(M, bm_)
        n = mp // bm_
        # v7x: keep the parallel row axis even so it splits across both TensorCores.
        if gen == "v7x" and n > 1 and n % 2 == 1:
            mp += bm_
            n += 1
        return mp, n

    # ---- decide: weights fully VMEM-resident vs streamed over a hidden-dim axis.
    weight_bytes = 2 * Cp * Hp * w_b                     # W1 + W2 (bf16)
    resident_vmem = (2 * bm * Cp * w_b                   # x tiles (double buffered)
                     + 2 * weight_bytes                  # weights (worst case 2 bufs)
                     + 2 * bm * Cp * out_b               # out tiles
                     + bm * Hp * 4                       # f32 intermediate h
                     + 2 * 8 * (Hp + Cp) * 4)            # biases (sublane padded)
    use_resident = resident_vmem <= int(0.9 * vmem_limit)

    if not use_resident:
        # Hidden tile: largest multiple of `align` <= h_tile that divides Hp.
        target = min(_round_up(h_tile, align), Hp)
        th = align
        t = target
        while t >= align:
            if Hp % t == 0:
                th = t
                break
            t -= align

        def stream_vmem(bm_):
            return (2 * bm_ * Cp * w_b                   # x tiles
                    + 2 * (Cp * th + th * Cp) * w_b      # W1/W2 tiles
                    + 2 * bm_ * Cp * out_b               # out tiles
                    + bm_ * Cp * 4                       # accumulator
                    + bm_ * th * 4                       # f32 intermediate h
                    + 2 * 8 * (Hp + Cp) * 4)             # biases

        while bm > 256 and stream_vmem(bm) > int(0.9 * vmem_limit):
            bm = max(256, bm // 2)

    Mp, n_row_tiles = _row_tiling(bm)

    # Pad activations (skipped when already aligned); cast to MXU dtype.
    x2 = x.reshape(M, C)
    if (Mp, Cp) != (M, C):
        x2 = jnp.pad(x2, ((0, Mp - M), (0, Cp - C)))
    x2 = x2.astype(compute_dtype)

    flops = 4 * Mp * Cp * Hp  # two matmuls, 2*M*K*N each

    if use_resident:
        cost = pl.CostEstimate(
            flops=flops, transcendentals=0,
            bytes_accessed=(Mp * Cp * w_b + weight_bytes + (Hp + Cp) * 4
                            + Mp * Cp * out_b))
        out2 = pl.pallas_call(
            ffn_kernel_resident,
            out_shape=jax.ShapeDtypeStruct((Mp, Cp), out_dtype),
            grid=(n_row_tiles,),
            in_specs=[
                pl.BlockSpec((bm, Cp), lambda i: (i, 0)),   # x row tile
                pl.BlockSpec((Cp, Hp), lambda i: (0, 0)),   # W1 (resident, DMA'd once)
                pl.BlockSpec((1, Hp), lambda i: (0, 0)),    # b1 (resident)
                pl.BlockSpec((Hp, Cp), lambda i: (0, 0)),   # W2 (resident, DMA'd once)
                pl.BlockSpec((1, Cp), lambda i: (0, 0)),    # b2 (resident)
            ],
            out_specs=pl.BlockSpec((bm, Cp), lambda i: (i, 0)),
            compiler_params=pltpu.CompilerParams(
                dimension_semantics=("parallel",),
                vmem_limit_bytes=vmem_limit),
            cost_estimate=cost,
        )(x2, w1p, b1p, w2p, b2p)
    else:
        grid = (n_row_tiles, Hp // th)
        cost = pl.CostEstimate(
            flops=flops, transcendentals=0,
            bytes_accessed=(Mp * Cp * w_b
                            + n_row_tiles * weight_bytes   # weights re-streamed/row tile
                            + (Hp + Cp) * 4
                            + Mp * Cp * out_b))
        if jnp.dtype(out_dtype) == jnp.dtype(jnp.float32):
            kernel = ffn_kernel_stream_accum_out
            scratch = []
        else:
            kernel = ffn_kernel_stream_scratch
            scratch = [pltpu.VMEM((bm, Cp), jnp.float32)]
        out2 = pl.pallas_call(
            kernel,
            out_shape=jax.ShapeDtypeStruct((Mp, Cp), out_dtype),
            grid=grid,
            in_specs=[
                pl.BlockSpec((bm, Cp), lambda i, j: (i, 0)),   # x row tile (resident over j)
                pl.BlockSpec((Cp, th), lambda i, j: (0, j)),   # W1 hidden tile
                pl.BlockSpec((1, Hp), lambda i, j: (0, 0)),    # b1 (resident, sliced in-kernel)
                pl.BlockSpec((th, Cp), lambda i, j: (j, 0)),   # W2 hidden tile
                pl.BlockSpec((1, Cp), lambda i, j: (0, 0)),    # b2 (resident)
            ],
            out_specs=pl.BlockSpec((bm, Cp), lambda i, j: (i, 0)),
            scratch_shapes=scratch,
            compiler_params=pltpu.CompilerParams(
                dimension_semantics=("parallel", "arbitrary"),
                vmem_limit_bytes=vmem_limit),
            cost_estimate=cost,
        )(x2, w1p, b1p, w2p, b2p)

    return out2[:M, :C].reshape(B, T, C)


if __name__ == "__main__":
    # Small config consistent with the module: n_embd=32, hidden=4*n_embd=128.
    B, T, C = 2, 8, 32
    H = 4 * C

    key = jax.random.PRNGKey(0)
    kx, kw1, kb1, kw2, kb2 = jax.random.split(key, 5)

    x = jax.random.normal(kx, (B, T, C), dtype=jnp.float32)
    # Deterministic "Linear" params, stored as (in, out) for the kernel.
    w1 = jax.random.normal(kw1, (C, H), dtype=jnp.float32) * 0.02
    b1 = jax.random.normal(kb1, (1, H), dtype=jnp.float32) * 0.02
    w2 = jax.random.normal(kw2, (H, C), dtype=jnp.float32) * 0.02
    b2 = jax.random.normal(kb2, (1, C), dtype=jnp.float32) * 0.02

    # Pad/cast params once (hoisted out of the per-call path).
    params = prepare_ffn_params(w1, b1, w2, b2)

    out = feedforward(x, *params)
    out = jax.block_until_ready(out)

    # Pure-JAX f32 reference (eval-mode dropout = identity). The kernel uses
    # bf16 MXU inputs with f32 accumulation, so compare with bf16-level tol.
    ref = (jnp.maximum(x.reshape(-1, C) @ w1 + b1, 0.0) @ w2 + b2).reshape(B, T, C)
    assert out.shape == (B, T, C)
    err = float(jnp.max(jnp.abs(out - ref)))
    assert jnp.allclose(out, ref, atol=1e-2, rtol=1e-2), err

    print("KERNEL_OK")
</pallas_src>

<mosaic_0001>
module attributes {stable_mosaic.version = 11 : i64} {
  func.func @ffn_kernel_resident(%arg0: i32, %arg1: memref<16x256xbf16, #tpu.memory_space<vmem>>, %arg2: memref<256x256xbf16, #tpu.memory_space<vmem>>, %arg3: memref<1x256xf32, #tpu.memory_space<vmem>>, %arg4: memref<256x256xbf16, #tpu.memory_space<vmem>>, %arg5: memref<1x256xf32, #tpu.memory_space<vmem>>, %arg6: memref<16x256xf32, #tpu.memory_space<vmem>>) attributes {dimension_semantics = [#tpu.dimension_semantics<parallel>], iteration_bounds = array<i64: 1>, scalar_prefetch = 0 : i64, scratch_operands = 0 : i64, tpu.core_type = #tpu.core_type<tc>, window_params = [{transform_indices = @transform_0, window_bounds = array<i64: 16, 256>}, {pipeline_mode = #tpu.pipeline_mode<synchronous>, transform_indices = @transform_1, window_bounds = array<i64: 256, 256>}, {pipeline_mode = #tpu.pipeline_mode<synchronous>, transform_indices = @transform_2, window_bounds = array<i64: 1, 256>}, {pipeline_mode = #tpu.pipeline_mode<synchronous>, transform_indices = @transform_3, window_bounds = array<i64: 256, 256>}, {pipeline_mode = #tpu.pipeline_mode<synchronous>, transform_indices = @transform_4, window_bounds = array<i64: 1, 256>}, {transform_indices = @transform_5, window_bounds = array<i64: 16, 256>}]} {
    %c0 = arith.constant 0 : index
    %c0_0 = arith.constant 0 : index
    %0 = vector.load %arg1[%c0, %c0_0] : memref<16x256xbf16, #tpu.memory_space<vmem>>, vector<16x256xbf16>
    %c0_1 = arith.constant 0 : index
    %c0_2 = arith.constant 0 : index
    %1 = vector.load %arg2[%c0_1, %c0_2] : memref<256x256xbf16, #tpu.memory_space<vmem>>, vector<256x256xbf16>
    %cst = arith.constant dense<0.000000e+00> : vector<16x256xf32>
    %2 = tpu.matmul %0, %1, %cst {dimension_numbers = #tpu.dot_dimension_numbers<[1], [0], [0], [1], [0, 0, 1, 1], [], []>} : vector<16x256xbf16>, vector<256x256xbf16>, vector<16x256xf32> -> vector<16x256xf32>
    %c0_3 = arith.constant 0 : index
    %c0_4 = arith.constant 0 : index
    %3 = vector.load %arg3[%c0_3, %c0_4] : memref<1x256xf32, #tpu.memory_space<vmem>>, vector<1x256xf32>
    %4 = vector.broadcast %3 : vector<1x256xf32> to vector<16x256xf32>
    %5 = arith.addf %2, %4 : vector<16x256xf32>
    %cst_5 = arith.constant 0.000000e+00 : f32
    %6 = vector.broadcast %cst_5 : f32 to vector<16x256xf32>
    %7 = arith.maximumf %5, %6 : vector<16x256xf32>
    %8 = arith.truncf %7 : vector<16x256xf32> to vector<16x256xbf16>
    %c0_6 = arith.constant 0 : index
    %c0_7 = arith.constant 0 : index
    %9 = vector.load %arg4[%c0_6, %c0_7] : memref<256x256xbf16, #tpu.memory_space<vmem>>, vector<256x256xbf16>
    %cst_8 = arith.constant dense<0.000000e+00> : vector<16x256xf32>
    %10 = tpu.matmul %8, %9, %cst_8 {dimension_numbers = #tpu.dot_dimension_numbers<[1], [0], [0], [1], [0, 0, 1, 1], [], []>} : vector<16x256xbf16>, vector<256x256xbf16>, vector<16x256xf32> -> vector<16x256xf32>
    %c0_9 = arith.constant 0 : index
    %c0_10 = arith.constant 0 : index
    %11 = vector.load %arg5[%c0_9, %c0_10] : memref<1x256xf32, #tpu.memory_space<vmem>>, vector<1x256xf32>
    %12 = vector.broadcast %11 : vector<1x256xf32> to vector<16x256xf32>
    %13 = arith.addf %10, %12 : vector<16x256xf32>
    %c0_11 = arith.constant 0 : index
    %c0_12 = arith.constant 0 : index
    %14 = vector.load %arg6[%c0_11, %c0_12] : memref<16x256xf32, #tpu.memory_space<vmem>>, vector<16x256xf32>
    tpu.vector_store %arg6[%c0_11, %c0_12], %13 {strides = array<i32>} : memref<16x256xf32, #tpu.memory_space<vmem>>, vector<16x256xf32>,
    return
  }
  func.func @transform_0(%arg0: i32) -> (i32, i32) {
    %c0_i32 = arith.constant 0 : i32
    %c0_i32_0 = arith.constant 0 : i32
    return %arg0, %c0_i32 : i32, i32
  }
  func.func @transform_1(%arg0: i32) -> (i32, i32) {
    %c0_i32 = arith.constant 0 : i32
    %c0_i32_0 = arith.constant 0 : i32
    %c0_i32_1 = arith.constant 0 : i32
    return %c0_i32, %c0_i32_0 : i32, i32
  }
  func.func @transform_2(%arg0: i32) -> (i32, i32) {
    %c0_i32 = arith.constant 0 : i32
    %c0_i32_0 = arith.constant 0 : i32
    %c0_i32_1 = arith.constant 0 : i32
    return %c0_i32, %c0_i32_0 : i32, i32
  }
  func.func @transform_3(%arg0: i32) -> (i32, i32) {
    %c0_i32 = arith.constant 0 : i32
    %c0_i32_0 = arith.constant 0 : i32
    %c0_i32_1 = arith.constant 0 : i32
    return %c0_i32, %c0_i32_0 : i32, i32
  }
  func.func @transform_4(%arg0: i32) -> (i32, i32) {
    %c0_i32 = arith.constant 0 : i32
    %c0_i32_0 = arith.constant 0 : i32
    %c0_i32_1 = arith.constant 0 : i32
    return %c0_i32, %c0_i32_0 : i32, i32
  }
  func.func @transform_5(%arg0: i32) -> (i32, i32) {
    %c0_i32 = arith.constant 0 : i32
    %c0_i32_0 = arith.constant 0 : i32
    return %arg0, %c0_i32 : i32, i32
  }
}

</mosaic_0001>

<llo_original>
// kernel: feedforward.1
$region0: #{feedforward.1}
  #allocation0 [shape = 'u32[]', space=smem, size = 0x4, offset = 0x4, fixed_abs, tag = 'smem constant byte address 0x4 - core index']
  #allocation1 [shape = 'u32[72,128]{1,0:T(1,128)}', space=vmem, size = 0x9000, scoped, tag = 'internal scratch']
  %s0 = inlined_call_operand.vmem [shape: bf16[16,256], index: 0, kind: input, shape index: {}]
  %s1 = inlined_call_operand.hbm [shape: bf16[256,256], index: 1, kind: input, shape index: {}]
  %s2 = inlined_call_operand.vmem [shape: f32[1,256], index: 2, kind: input, shape index: {}]
  %s3 = inlined_call_operand.hbm [shape: bf16[256,256], index: 3, kind: input, shape index: {}]
  %s4 = inlined_call_operand.vmem [shape: f32[1,256], index: 4, kind: input, shape index: {}]
  %s5 = inlined_call_operand.vmem [shape: f32[16,256], index: 5, kind: output, shape index: {}]
  %s6 = sld [smem:[#allocation0]]
  $region38: #{feedforward.1} parent=0
    _
  %s8 = ssub.s32 1, %s6
  %s9 = scalar_select 0, %s8, %s6
  $region1: #{feedforward.1} parent=0
    #allocation2 [shape = 'u8[131072]{0}', space=vmem, size = 0x20000, scoped, tag = 'input window, operand 1, single buffered']
    #allocation3 [shape = 's32[1]{0}', space=sflag, size = 0x4, scoped, tag = 'scoped memory for feedforward.1']
    #allocation4 [shape = 'u8[131072]{0}', space=vmem, size = 0x20000, scoped, tag = 'input window, operand 3, single buffered']
    #allocation5 [shape = 's32[1]{0}', space=sflag, size = 0x4, scoped, tag = 'scoped memory for feedforward.1']
    %10 = vsyncpa [#allocation3], 0
    %11 = vsyncpa [#allocation5], 0
    // Predicated region
    $region2: #{feedforward.1} parent=1 // pred_check
      _
    $region3: #{feedforward.1} parent=1 // pred_check_branch
      %13 = sbr.rel (0) target = $region5
    $region4: #{feedforward.1} parent=1 // pred_region
      _
    $region5: #{feedforward.1} parent=1 // pred_fallthru
      _
    // Predicated region
    $region6: #{feedforward.1} parent=1 // pred_check
      _
    $region7: #{feedforward.1} parent=1 // pred_check_branch
      %15 = sbr.rel (0) target = $region9
    $region8: #{feedforward.1} parent=1 // pred_region
      %17 = vsyncadd [#allocation3], 0
      %s18 = sshll.u32 %s1, 4
      %s19 = int_to_ptr.hbm [resolvable:$true] %s18
      %s20 = sshll.u32 [#allocation2], 4
      %s21 = int_to_ptr.vmem [resolvable:$true] %s20
      %26 = dma.hbm_to_vmem [thread:$0]  %s19, 4096, %s21, [#allocation3], 128, 128, 8
    $region9: #{feedforward.1} parent=1 // pred_fallthru
      _
    // Predicated region
    $region10: #{feedforward.1} parent=1 // pred_check
      _
    $region11: #{feedforward.1} parent=1 // pred_check_branch
      %28 = sbr.rel (0) target = $region13
    $region12: #{feedforward.1} parent=1 // pred_region
      _
    $region13: #{feedforward.1} parent=1 // pred_fallthru
      _
    // Predicated region
    $region14: #{feedforward.1} parent=1 // pred_check
      _
    $region15: #{feedforward.1} parent=1 // pred_check_branch
      %30 = sbr.rel (0) target = $region17
    $region16: #{feedforward.1} parent=1 // pred_region
      %32 = vsyncadd [#allocation5], 0
      %s33 = sshll.u32 %s3, 4
      %s34 = int_to_ptr.hbm [resolvable:$true] %s33
      %s35 = sshll.u32 [#allocation4], 4
      %s36 = int_to_ptr.vmem [resolvable:$true] %s35
      %41 = dma.hbm_to_vmem [thread:$0]  %s34, 4096, %s36, [#allocation5], 128, 128, 8
    $region17: #{feedforward.1} parent=1 // pred_fallthru
      _
    // Predicated region
    $region18: #{feedforward.1} parent=1 // pred_check
      _
    $region19: #{feedforward.1} parent=1 // pred_check_branch
      %43 = sbr.rel (0) target = $region21
    $region20: #{feedforward.1} parent=1 // pred_region
      _
    $region21: #{feedforward.1} parent=1 // pred_fallthru
      _
    // Predicated region
    $region22: #{feedforward.1} parent=1 // pred_check
      _
    $region23: #{feedforward.1} parent=1 // pred_check_branch
      %45 = sbr.rel (0) target = $region25
    $region24: #{feedforward.1} parent=1 // pred_region
      %47 = dma.done [#allocation3], 4096
    $region25: #{feedforward.1} parent=1 // pred_fallthru
      _
    // Predicated region
    $region26: #{feedforward.1} parent=1 // pred_check
      _
    $region27: #{feedforward.1} parent=1 // pred_check_branch
      %49 = sbr.rel (0) target = $region29
    $region28: #{feedforward.1} parent=1 // pred_region
      %51 = dma.done [#allocation5], 4096
    $region29: #{feedforward.1} parent=1 // pred_fallthru
      _
    %v52 = vld [vmem:[%s0] sm:$0xff]
    %v53 = vld [vmem:[%s0 + $0x8] sm:$0xff]
    %v54 = vld [vmem:[#allocation2] sm:$0xff]
    %v55 = vld [vmem:[#allocation2 + $0x8] sm:$0xff]
    %v56 = vld [vmem:[#allocation2 + $0x10] sm:$0xff]
    %v57 = vld [vmem:[#allocation2 + $0x18] sm:$0xff]
    %v58 = vld [vmem:[#allocation2 + $0x20] sm:$0xff]
    %v59 = vld [vmem:[#allocation2 + $0x28] sm:$0xff]
    %v60 = vld [vmem:[#allocation2 + $0x30] sm:$0xff]
    %v61 = vld [vmem:[#allocation2 + $0x38] sm:$0xff]
    %v62 = vld [vmem:[#allocation2 + $0x40] sm:$0xff]
    %v63 = vld [vmem:[#allocation2 + $0x48] sm:$0xff]
    %v64 = vld [vmem:[#allocation2 + $0x50] sm:$0xff]
    %v65 = vld [vmem:[#allocation2 + $0x58] sm:$0xff]
    %v66 = vld [vmem:[#allocation2 + $0x60] sm:$0xff]
    %v67 = vld [vmem:[#allocation2 + $0x68] sm:$0xff]
    %v68 = vld [vmem:[#allocation2 + $0x70] sm:$0xff]
    %v69 = vld [vmem:[#allocation2 + $0x78] sm:$0xff]
    %v70 = vld [vmem:[#allocation2 + $0x80] sm:$0xff]
    %v71 = vld [vmem:[#allocation2 + $0x88] sm:$0xff]
    %v72 = vld [vmem:[#allocation2 + $0x90] sm:$0xff]
    %v73 = vld [vmem:[#allocation2 + $0x98] sm:$0xff]
    %v74 = vld [vmem:[#allocation2 + $0xa0] sm:$0xff]
    %v75 = vld [vmem:[#allocation2 + $0xa8] sm:$0xff]
    %v76 = vld [vmem:[#allocation2 + $0xb0] sm:$0xff]
    %v77 = vld [vmem:[#allocation2 + $0xb8] sm:$0xff]
    %v78 = vld [vmem:[#allocation2 + $0xc0] sm:$0xff]
    %v79 = vld [vmem:[#allocation2 + $0xc8] sm:$0xff]
    %v80 = vld [vmem:[#allocation2 + $0xd0] sm:$0xff]
    %v81 = vld [vmem:[#allocation2 + $0xd8] sm:$0xff]
    %v82 = vld [vmem:[#allocation2 + $0xe0] sm:$0xff]
    %v83 = vld [vmem:[#allocation2 + $0xe8] sm:$0xff]
    %v84 = vld [vmem:[#allocation2 + $0xf0] sm:$0xff]
    %v85 = vld [vmem:[#allocation2 + $0xf8] sm:$0xff]
    %v86 = vld [vmem:[%s2] sm:$0x3]
    %v88 = vperm.slane %v86, 0
    %v89 = vperm.slane %v86, 1
    %v94 = vunpack.c.l.b16 %v52
    %v95 = vunpack.c.h.b16 %v52
    %v96 = vunpack.c.l.b16 %v53
    %v97 = vunpack.c.h.b16 %v53
    %v98 = vpack.c.b16 %v96, %v94
    %v99 = vpack.c.b16 %v97, %v95
    %v134 = vunpack.c.l.b16 %v54
    %v135 = vunpack.c.h.b16 %v54
    %v136 = vunpack.c.l.b16 %v55
    %v137 = vunpack.c.h.b16 %v55
    %v138 = vunpack.c.l.b16 %v56
    %v139 = vunpack.c.h.b16 %v56
    %v140 = vunpack.c.l.b16 %v57
    %v141 = vunpack.c.h.b16 %v57
    %v142 = vunpack.c.l.b16 %v58
    %v143 = vunpack.c.h.b16 %v58
    %v144 = vunpack.c.l.b16 %v59
    %v145 = vunpack.c.h.b16 %v59
    %v146 = vunpack.c.l.b16 %v60
    %v147 = vunpack.c.h.b16 %v60
    %v148 = vunpack.c.l.b16 %v61
    %v149 = vunpack.c.h.b16 %v61
    %v150 = vunpack.c.l.b16 %v62
    %v151 = vunpack.c.h.b16 %v62
    %v152 = vunpack.c.l.b16 %v63
    %v153 = vunpack.c.h.b16 %v63
    %v154 = vunpack.c.l.b16 %v64
    %v155 = vunpack.c.h.b16 %v64
    %v156 = vunpack.c.l.b16 %v65
    %v157 = vunpack.c.h.b16 %v65
    %v158 = vunpack.c.l.b16 %v66
    %v159 = vunpack.c.h.b16 %v66
    %v160 = vunpack.c.l.b16 %v67
    %v161 = vunpack.c.h.b16 %v67
    %v162 = vunpack.c.l.b16 %v68
    %v163 = vunpack.c.h.b16 %v68
    %v164 = vunpack.c.l.b16 %v69
    %v165 = vunpack.c.h.b16 %v69
    %v166 = vunpack.c.l.b16 %v70
    %v167 = vunpack.c.h.b16 %v70
    %v168 = vunpack.c.l.b16 %v71
    %v169 = vunpack.c.h.b16 %v71
    %v170 = vunpack.c.l.b16 %v72
    %v171 = vunpack.c.h.b16 %v72
    %v172 = vunpack.c.l.b16 %v73
    %v173 = vunpack.c.h.b16 %v73
    %v174 = vunpack.c.l.b16 %v74
    %v175 = vunpack.c.h.b16 %v74
    %v176 = vunpack.c.l.b16 %v75
    %v177 = vunpack.c.h.b16 %v75
    %v178 = vunpack.c.l.b16 %v76
    %v179 = vunpack.c.h.b16 %v76
    %v180 = vunpack.c.l.b16 %v77
    %v181 = vunpack.c.h.b16 %v77
    %v182 = vunpack.c.l.b16 %v78
    %v183 = vunpack.c.h.b16 %v78
    %v184 = vunpack.c.l.b16 %v79
    %v185 = vunpack.c.h.b16 %v79
    %v186 = vunpack.c.l.b16 %v80
    %v187 = vunpack.c.h.b16 %v80
    %v188 = vunpack.c.l.b16 %v81
    %v189 = vunpack.c.h.b16 %v81
    %v190 = vunpack.c.l.b16 %v82
    %v191 = vunpack.c.h.b16 %v82
    %v192 = vunpack.c.l.b16 %v83
    %v193 = vunpack.c.h.b16 %v83
    %v194 = vunpack.c.l.b16 %v84
    %v195 = vunpack.c.h.b16 %v84
    %v196 = vunpack.c.l.b16 %v85
    %v197 = vunpack.c.h.b16 %v85
    %v198 = vpack.c.b16 %v136, %v134
    %v199 = vpack.c.b16 %v137, %v135
    %v200 = vpack.c.b16 %v140, %v138
    %v201 = vpack.c.b16 %v141, %v139
    %v202 = vpack.c.b16 %v144, %v142
    %v203 = vpack.c.b16 %v145, %v143
    %v204 = vpack.c.b16 %v148, %v146
    %v205 = vpack.c.b16 %v149, %v147
    %v206 = vpack.c.b16 %v152, %v150
    %v207 = vpack.c.b16 %v153, %v151
    %v208 = vpack.c.b16 %v156, %v154
    %v209 = vpack.c.b16 %v157, %v155
    %v210 = vpack.c.b16 %v160, %v158
    %v211 = vpack.c.b16 %v161, %v159
    %v212 = vpack.c.b16 %v164, %v162
    %v213 = vpack.c.b16 %v165, %v163
    %v214 = vpack.c.b16 %v168, %v166
    %v215 = vpack.c.b16 %v169, %v167
    %v216 = vpack.c.b16 %v172, %v170
    %v217 = vpack.c.b16 %v173, %v171
    %v218 = vpack.c.b16 %v176, %v174
    %v219 = vpack.c.b16 %v177, %v175
    %v220 = vpack.c.b16 %v180, %v178
    %v221 = vpack.c.b16 %v181, %v179
    %v222 = vpack.c.b16 %v184, %v182
    %v223 = vpack.c.b16 %v185, %v183
    %v224 = vpack.c.b16 %v188, %v186
    %v225 = vpack.c.b16 %v189, %v187
    %v226 = vpack.c.b16 %v192, %v190
    %v227 = vpack.c.b16 %v193, %v191
    %v228 = vpack.c.b16 %v196, %v194
    %v229 = vpack.c.b16 %v197, %v195
    %262 = vmatpush.bf16.msra.mxu0 %v212
    %263 = vmatpush.bf16.msra.mxu0 %v210
    %264 = vmatpush.bf16.msra.mxu0 %v208
    %265 = vmatpush.bf16.msra.mxu0 %v206
    %266 = vmatpush.bf16.msra.mxu0 %v204
    %267 = vmatpush.bf16.msra.mxu0 %v202
    %268 = vmatpush.bf16.msra.mxu0 %v200
    %269 = vmatpush.bf16.msra.mxu0 %v198
    %270 = vmatmul.bf16.gmra.mxu0 %v98
    %v271 = vpop.f32.mrf.mxu0
    %v272 = vadd.f32 %v88, %v271
    %v273 = vpop.f32.mrf.mxu0
    %v274 = vadd.f32 %v88, %v273
    %275 = vdwg.mxu0
    %276 = vmatpush.bf16.msra.mxu0 %v228
    %277 = vmatpush.bf16.msra.mxu0 %v226
    %278 = vmatpush.bf16.msra.mxu0 %v224
    %279 = vmatpush.bf16.msra.mxu0 %v222
    %280 = vmatpush.bf16.msra.mxu0 %v220
    %281 = vmatpush.bf16.msra.mxu0 %v218
    %282 = vmatpush.bf16.msra.mxu0 %v216
    %283 = vmatpush.bf16.msra.mxu0 %v214
    %284 = vmatmul.bf16.gmra.mxu0 %v99
    %v285 = vpop.f32.mrf.mxu0
    %v286 = vadd.f32 %v272, %v285
    %v287 = vpop.f32.mrf.mxu0
    %v288 = vadd.f32 %v274, %v287
    %289 = vdwg.mxu0
    %290 = vmatpush.bf16.msra.mxu0 %v213
    %291 = vmatpush.bf16.msra.mxu0 %v211
    %292 = vmatpush.bf16.msra.mxu0 %v209
    %293 = vmatpush.bf16.msra.mxu0 %v207
    %294 = vmatpush.bf16.msra.mxu0 %v205
    %295 = vmatpush.bf16.msra.mxu0 %v203
    %296 = vmatpush.bf16.msra.mxu0 %v201
    %297 = vmatpush.bf16.msra.mxu0 %v199
    %298 = vmatmul.bf16.gmra.mxu0 %v98
    %v299 = vpop.f32.mrf.mxu0
    %v300 = vadd.f32 %v89, %v299
    %v301 = vpop.f32.mrf.mxu0
    %v302 = vadd.f32 %v89, %v301
    %303 = vdwg.mxu0
    %304 = vmatpush.bf16.msra.mxu0 %v229
    %305 = vmatpush.bf16.msra.mxu0 %v227
    %306 = vmatpush.bf16.msra.mxu0 %v225
    %307 = vmatpush.bf16.msra.mxu0 %v223
    %308 = vmatpush.bf16.msra.mxu0 %v221
    %309 = vmatpush.bf16.msra.mxu0 %v219
    %310 = vmatpush.bf16.msra.mxu0 %v217
    %311 = vmatpush.bf16.msra.mxu0 %v215
    %312 = vmatmul.bf16.gmra.mxu0 %v99
    %v313 = vpop.f32.mrf.mxu0
    %v314 = vadd.f32 %v300, %v313
    %v315 = vpop.f32.mrf.mxu0
    %v316 = vadd.f32 %v302, %v315
    %317 = vdwg.mxu0
    %v318 = vmax.f32 %v286, 0.0
    %v319 = vmax.f32 %v314, 0.0
    %v320 = vmax.f32 %v288, 0.0
    %v321 = vmax.f32 %v316, 0.0
    %v322 = vpack.c.bf16 %v320, %v318
    %v323 = vpack.c.bf16 %v321, %v319
    %v324 = vld [vmem:[#allocation4] sm:$0xff]
    %v325 = vld [vmem:[#allocation4 + $0x8] sm:$0xff]
    %v326 = vld [vmem:[#allocation4 + $0x10] sm:$0xff]
    %v327 = vld [vmem:[#allocation4 + $0x18] sm:$0xff]
    %v328 = vld [vmem:[#allocation4 + $0x20] sm:$0xff]
    %v329 = vld [vmem:[#allocation4 + $0x28] sm:$0xff]
    %v330 = vld [vmem:[#allocation4 + $0x30] sm:$0xff]
    %v331 = vld [vmem:[#allocation4 + $0x38] sm:$0xff]
    %v332 = vld [vmem:[#allocation4 + $0x40] sm:$0xff]
    %v333 = vld [vmem:[#allocation4 + $0x48] sm:$0xff]
    %v334 = vld [vmem:[#allocation4 + $0x50] sm:$0xff]
    %v335 = vld [vmem:[#allocation4 + $0x58] sm:$0xff]
    %v336 = vld [vmem:[#allocation4 + $0x60] sm:$0xff]
    %v337 = vld [vmem:[#allocation4 + $0x68] sm:$0xff]
    %v338 = vld [vmem:[#allocation4 + $0x70] sm:$0xff]
    %v339 = vld [vmem:[#allocation4 + $0x78] sm:$0xff]
    %v340 = vld [vmem:[#allocation4 + $0x80] sm:$0xff]
    %v341 = vld [vmem:[#allocation4 + $0x88] sm:$0xff]
    %v342 = vld [vmem:[#allocation4 + $0x90] sm:$0xff]
    %v343 = vld [vmem:[#allocation4 + $0x98] sm:$0xff]
    %v344 = vld [vmem:[#allocation4 + $0xa0] sm:$0xff]
    %v345 = vld [vmem:[#allocation4 + $0xa8] sm:$0xff]
    %v346 = vld [vmem:[#allocation4 + $0xb0] sm:$0xff]
    %v347 = vld [vmem:[#allocation4 + $0xb8] sm:$0xff]
    %v348 = vld [vmem:[#allocation4 + $0xc0] sm:$0xff]
    %v349 = vld [vmem:[#allocation4 + $0xc8] sm:$0xff]
    %v350 = vld [vmem:[#allocation4 + $0xd0] sm:$0xff]
    %v351 = vld [vmem:[#allocation4 + $0xd8] sm:$0xff]
    %v352 = vld [vmem:[#allocation4 + $0xe0] sm:$0xff]
    %v353 = vld [vmem:[#allocation4 + $0xe8] sm:$0xff]
    %v354 = vld [vmem:[#allocation4 + $0xf0] sm:$0xff]
    %v355 = vld [vmem:[#allocation4 + $0xf8] sm:$0xff]
    %v356 = vld [vmem:[%s4] sm:$0x3]
    %v358 = vperm.slane %v356, 0
    %v359 = vperm.slane %v356, 1
    %v394 = vunpack.c.l.b16 %v324
    %v395 = vunpack.c.h.b16 %v324
    %v396 = vunpack.c.l.b16 %v325
    %v397 = vunpack.c.h.b16 %v325
    %v398 = vunpack.c.l.b16 %v326
    %v399 = vunpack.c.h.b16 %v326
    %v400 = vunpack.c.l.b16 %v327
    %v401 = vunpack.c.h.b16 %v327
    %v402 = vunpack.c.l.b16 %v328
    %v403 = vunpack.c.h.b16 %v328
    %v404 = vunpack.c.l.b16 %v329
    %v405 = vunpack.c.h.b16 %v329
    %v406 = vunpack.c.l.b16 %v330
    %v407 = vunpack.c.h.b16 %v330
    %v408 = vunpack.c.l.b16 %v331
    %v409 = vunpack.c.h.b16 %v331
    %v410 = vunpack.c.l.b16 %v332
    %v411 = vunpack.c.h.b16 %v332
    %v412 = vunpack.c.l.b16 %v333
    %v413 = vunpack.c.h.b16 %v333
    %v414 = vunpack.c.l.b16 %v334
    %v415 = vunpack.c.h.b16 %v334
    %v416 = vunpack.c.l.b16 %v335
    %v417 = vunpack.c.h.b16 %v335
    %v418 = vunpack.c.l.b16 %v336
    %v419 = vunpack.c.h.b16 %v336
    %v420 = vunpack.c.l.b16 %v337
    %v421 = vunpack.c.h.b16 %v337
    %v422 = vunpack.c.l.b16 %v338
    %v423 = vunpack.c.h.b16 %v338
    %v424 = vunpack.c.l.b16 %v339
    %v425 = vunpack.c.h.b16 %v339
    %v426 = vunpack.c.l.b16 %v340
    %v427 = vunpack.c.h.b16 %v340
    %v428 = vunpack.c.l.b16 %v341
    %v429 = vunpack.c.h.b16 %v341
    %v430 = vunpack.c.l.b16 %v342
    %v431 = vunpack.c.h.b16 %v342
    %v432 = vunpack.c.l.b16 %v343
    %v433 = vunpack.c.h.b16 %v343
    %v434 = vunpack.c.l.b16 %v344
    %v435 = vunpack.c.h.b16 %v344
    %v436 = vunpack.c.l.b16 %v345
    %v437 = vunpack.c.h.b16 %v345
    %v438 = vunpack.c.l.b16 %v346
    %v439 = vunpack.c.h.b16 %v346
    %v440 = vunpack.c.l.b16 %v347
    %v441 = vunpack.c.h.b16 %v347
    %v442 = vunpack.c.l.b16 %v348
    %v443 = vunpack.c.h.b16 %v348
    %v444 = vunpack.c.l.b16 %v349
    %v445 = vunpack.c.h.b16 %v349
    %v446 = vunpack.c.l.b16 %v350
    %v447 = vunpack.c.h.b16 %v350
    %v448 = vunpack.c.l.b16 %v351
    %v449 = vunpack.c.h.b16 %v351
    %v450 = vunpack.c.l.b16 %v352
    %v451 = vunpack.c.h.b16 %v352
    %v452 = vunpack.c.l.b16 %v353
    %v453 = vunpack.c.h.b16 %v353
    %v454 = vunpack.c.l.b16 %v354
    %v455 = vunpack.c.h.b16 %v354
    %v456 = vunpack.c.l.b16 %v355
    %v457 = vunpack.c.h.b16 %v355
    %v458 = vpack.c.b16 %v396, %v394
    %v459 = vpack.c.b16 %v397, %v395
    %v460 = vpack.c.b16 %v400, %v398
    %v461 = vpack.c.b16 %v401, %v399
    %v462 = vpack.c.b16 %v404, %v402
    %v463 = vpack.c.b16 %v405, %v403
    %v464 = vpack.c.b16 %v408, %v406
    %v465 = vpack.c.b16 %v409, %v407
    %v466 = vpack.c.b16 %v412, %v410
    %v467 = vpack.c.b16 %v413, %v411
    %v468 = vpack.c.b16 %v416, %v414
    %v469 = vpack.c.b16 %v417, %v415
    %v470 = vpack.c.b16 %v420, %v418
    %v471 = vpack.c.b16 %v421, %v419
    %v472 = vpack.c.b16 %v424, %v422
    %v473 = vpack.c.b16 %v425, %v423
    %v474 = vpack.c.b16 %v428, %v426
    %v475 = vpack.c.b16 %v429, %v427
    %v476 = vpack.c.b16 %v432, %v430
    %v477 = vpack.c.b16 %v433, %v431
    %v478 = vpack.c.b16 %v436, %v434
    %v479 = vpack.c.b16 %v437, %v435
    %v480 = vpack.c.b16 %v440, %v438
    %v481 = vpack.c.b16 %v441, %v439
    %v482 = vpack.c.b16 %v444, %v442
    %v483 = vpack.c.b16 %v445, %v443
    %v484 = vpack.c.b16 %v448, %v446
    %v485 = vpack.c.b16 %v449, %v447
    %v486 = vpack.c.b16 %v452, %v450
    %v487 = vpack.c.b16 %v453, %v451
    %v488 = vpack.c.b16 %v456, %v454
    %v489 = vpack.c.b16 %v457, %v455
    %522 = vmatpush.bf16.msra.mxu0 %v472
    %523 = vmatpush.bf16.msra.mxu0 %v470
    %524 = vmatpush.bf16.msra.mxu0 %v468
    %525 = vmatpush.bf16.msra.mxu0 %v466
    %526 = vmatpush.bf16.msra.mxu0 %v464
    %527 = vmatpush.bf16.msra.mxu0 %v462
    %528 = vmatpush.bf16.msra.mxu0 %v460
    %529 = vmatpush.bf16.msra.mxu0 %v458
    %530 = vmatmul.bf16.gmra.mxu0 %v322
    %v531 = vpop.f32.mrf.mxu0
    %v532 = vadd.f32 %v358, %v531
    %v533 = vpop.f32.mrf.mxu0
    %v534 = vadd.f32 %v358, %v533
    %535 = vdwg.mxu0
    %536 = vmatpush.bf16.msra.mxu0 %v488
    %537 = vmatpush.bf16.msra.mxu0 %v486
    %538 = vmatpush.bf16.msra.mxu0 %v484
    %539 = vmatpush.bf16.msra.mxu0 %v482
    %540 = vmatpush.bf16.msra.mxu0 %v480
    %541 = vmatpush.bf16.msra.mxu0 %v478
    %542 = vmatpush.bf16.msra.mxu0 %v476
    %543 = vmatpush.bf16.msra.mxu0 %v474
    %544 = vmatmul.bf16.gmra.mxu0 %v323
    %v545 = vpop.f32.mrf.mxu0
    %v546 = vadd.f32 %v532, %v545
    %v547 = vpop.f32.mrf.mxu0
    %v548 = vadd.f32 %v534, %v547
    %549 = vdwg.mxu0
    %550 = vmatpush.bf16.msra.mxu0 %v473
    %551 = vmatpush.bf16.msra.mxu0 %v471
    %552 = vmatpush.bf16.msra.mxu0 %v469
    %553 = vmatpush.bf16.msra.mxu0 %v467
    %554 = vmatpush.bf16.msra.mxu0 %v465
    %555 = vmatpush.bf16.msra.mxu0 %v463
    %556 = vmatpush.bf16.msra.mxu0 %v461
    %557 = vmatpush.bf16.msra.mxu0 %v459
    %558 = vmatmul.bf16.gmra.mxu0 %v322
    %v559 = vpop.f32.mrf.mxu0
    %v560 = vadd.f32 %v359, %v559
    %v561 = vpop.f32.mrf.mxu0
    %v562 = vadd.f32 %v359, %v561
    %563 = vdwg.mxu0
    %564 = vmatpush.bf16.msra.mxu0 %v489
    %565 = vmatpush.bf16.msra.mxu0 %v487
    %566 = vmatpush.bf16.msra.mxu0 %v485
    %567 = vmatpush.bf16.msra.mxu0 %v483
    %568 = vmatpush.bf16.msra.mxu0 %v481
    %569 = vmatpush.bf16.msra.mxu0 %v479
    %570 = vmatpush.bf16.msra.mxu0 %v477
    %571 = vmatpush.bf16.msra.mxu0 %v475
    %572 = vmatmul.bf16.gmra.mxu0 %v323
    %v573 = vpop.f32.mrf.mxu0
    %v574 = vadd.f32 %v560, %v573
    %v575 = vpop.f32.mrf.mxu0
    %v576 = vadd.f32 %v562, %v575
    %577 = vdwg.mxu0
    %578 = vst [vmem:[%s5] sm:$0xff] %v546
    %579 = vst [vmem:[%s5 + $0x8] sm:$0xff] %v574
    %580 = vst [vmem:[%s5 + $0x10] sm:$0xff] %v548
    %581 = vst [vmem:[%s5 + $0x18] sm:$0xff] %v576
    // Predicated region
    $region30: #{feedforward.1} parent=1 // pred_check
      _
    $region31: #{feedforward.1} parent=1 // pred_check_branch
      %583 = sbr.rel (0) target = $region33
    $region32: #{feedforward.1} parent=1 // pred_region
      _
    $region33: #{feedforward.1} parent=1 // pred_fallthru
      _
    // Predicated region
    $region34: #{feedforward.1} parent=1 // pred_check
      _
    $region35: #{feedforward.1} parent=1 // pred_check_branch
      %585 = sbr.rel (0) target = $region37
    $region36: #{feedforward.1} parent=1 // pred_region
      _
    $region37: #{feedforward.1} parent=1 // pred_fallthru
      _
    %586 = vsyncpa [#allocation3], 1
    %587 = vsyncpa [#allocation5], 1

</llo_original>
